<compile_context>
chip_gen: v5e
topology: v5e:2x2
jax: 0.10.0
libtpu: 0.0.40
codegen_flags: <defaults>
</compile_context>

<pallas_src>
import jax
import jax.numpy as jnp
from jax import lax
from jax.experimental import pallas as pl
from jax.experimental.pallas import tpu as pltpu

_LANE = 128
_SUBLANE = 8
_DEFAULT_MAX_TILE_B = 2048          # rows; ~0.6 MiB of streamed tiles at In=16
_VMEM_BUDGET = 16 * 1024 * 1024     # conservative: fits default scoped VMEM on v5e/v6e/v7x


def _round_up(v, m):
    return ((v + m - 1) // m) * m


def _mlp_kernel(x_ref, w1_ref, b1_ref, w2_ref, b2_ref, out_ref):
    # x_ref  : (TB, In)       streamed batch tile
    # w1_ref : (H, In)        resident, PyTorch nn.Linear layout
    # b1_ref : (H, 1)         resident (column bias)
    # w2_ref : (OutPad, H)    resident, Out padded to sublane multiple (8)
    # b2_ref : (OutPad, 1)    resident (column bias)
    # out_ref: (OutPad, TB)   transposed, lane-dense output (TB on lanes)
    x = x_ref[...]

    # h^T = W1 @ x^T : LHS contracts its last dim (canonical), RHS contracts
    # its last dim (native transposed-RHS MXU path).  -> (H, TB), f32 acc.
    h = lax.dot_general(
        w1_ref[...], x,
        dimension_numbers=(((1,), (1,)), ((), ())),
        preferred_element_type=jnp.float32)
    h = jnp.maximum(h + b1_ref[...], 0.0)            # f32 bias + ReLU on VPU

    # out^T = W2 @ h^T : fully canonical (M,K) x (K,N).  -> (OutPad, TB)
    o = lax.dot_general(
        w2_ref[...], h,
        dimension_numbers=(((1,), (0,)), ((), ())),
        preferred_element_type=jnp.float32)
    out_ref[...] = (o + b2_ref[...]).astype(out_ref.dtype)


def three_class_nn_forward(x, w1, b1, w2, b2, *, tile_b=None):
    """Forward pass matching PyTorch ThreeClassNN.

    x  : (B, input_size)        float32
    w1 : (hidden, input_size)   float32   (PyTorch nn.Linear weight layout)
    b1 : (hidden,)              float32
    w2 : (output, hidden)       float32
    b2 : (output,)              float32
    returns (B, output) float32
    """
    B, In = x.shape
    H = w1.shape[0]
    Out = w2.shape[0]

    # Classes padded only to a sublane multiple; batch rows go on lanes.
    out_pad = _round_up(Out, _SUBLANE)

    if tile_b is None:
        # Largest lane-aligned tile fitting a VMEM budget that is safe on all
        # generations (v7x has 64 MiB physical / 32 MiB default scoped VMEM).
        # Per-row bytes: double-buffered x + out tiles plus the h intermediate.
        bytes_per_row = 4 * (2 * In + 2 * out_pad + H)
        weight_bytes = 4 * (H * In + H + out_pad * H + out_pad)
        fit_rows = max(_LANE, (_VMEM_BUDGET - weight_bytes) // bytes_per_row)
        tile_b = min(_DEFAULT_MAX_TILE_B,
                     (fit_rows // _LANE) * _LANE,
                     _round_up(B, _LANE))
    # Lane-dense, BlockSpec-legal output tile: multiple of 128 lanes.
    tile_b = max(_LANE, _round_up(tile_b, _LANE))
    b_pad = pl.cdiv(B, tile_b) * tile_b
    n_tiles = b_pad // tile_b   # >= 2 steps -> both TCs engaged on v7x

    x_p = x if b_pad == B else jnp.pad(x, ((0, b_pad - B), (0, 0)))
    w2_p = w2 if out_pad == Out else jnp.pad(w2, ((0, out_pad - Out), (0, 0)))
    b2_p = b2 if out_pad == Out else jnp.pad(b2, ((0, out_pad - Out),))

    b1_col = b1.reshape(H, 1)
    b2_col = b2_p.reshape(out_pad, 1)

    flops = 2 * b_pad * (In * H + H * out_pad)
    bytes_accessed = 4 * (b_pad * In + H * In + H
                          + out_pad * H + out_pad + b_pad * out_pad)
    cost = pl.CostEstimate(flops=flops, transcendentals=0,
                           bytes_accessed=bytes_accessed)

    out_t = pl.pallas_call(
        _mlp_kernel,
        out_shape=jax.ShapeDtypeStruct((out_pad, b_pad), jnp.float32),
        grid_spec=pltpu.PrefetchScalarGridSpec(
            num_scalar_prefetch=0,
            grid=(n_tiles,),
            in_specs=[
                pl.BlockSpec((tile_b, In), lambda i: (i, 0)),    # x: streamed
                pl.BlockSpec((H, In), lambda i: (0, 0)),         # W1: resident
                pl.BlockSpec((H, 1), lambda i: (0, 0)),          # b1: resident
                pl.BlockSpec((out_pad, H), lambda i: (0, 0)),    # W2: resident
                pl.BlockSpec((out_pad, 1), lambda i: (0, 0)),    # b2: resident
            ],
            out_specs=pl.BlockSpec((out_pad, tile_b), lambda i: (0, i)),
        ),
        compiler_params=pltpu.CompilerParams(
            dimension_semantics=("parallel",)),
        cost_estimate=cost,
    )(x_p, w1, b1_col, w2_p, b2_col)

    # (OutPad, b_pad) -> (B, Out).  Padded batch columns carry garbage
    # (ReLU(b1) @ W2^T + b2) and padded class rows are zero; both are sliced
    # away here — never skip this slice.
    return out_t[:Out, :B].T


if __name__ == "__main__":
    # Small shapes implied by the module: tabular features -> hidden -> 3 classes.
    batch_size = 32
    input_size = 16
    hidden_size = 32
    output_size = 3

    key = jax.random.PRNGKey(0)
    kx, k1, kb1, k2, kb2, kx2 = jax.random.split(key, 6)

    x = jax.random.normal(kx, (batch_size, input_size), dtype=jnp.float32)
    lim1 = 1.0 / (input_size ** 0.5)
    w1 = jax.random.uniform(k1, (hidden_size, input_size),
                            minval=-lim1, maxval=lim1, dtype=jnp.float32)
    b1 = jax.random.uniform(kb1, (hidden_size,),
                            minval=-lim1, maxval=lim1, dtype=jnp.float32)
    lim2 = 1.0 / (hidden_size ** 0.5)
    w2 = jax.random.uniform(k2, (output_size, hidden_size),
                            minval=-lim2, maxval=lim2, dtype=jnp.float32)
    b2 = jax.random.uniform(kb2, (output_size,),
                            minval=-lim2, maxval=lim2, dtype=jnp.float32)

    def ref_fwd(xv):
        return jnp.maximum(xv @ w1.T + b1, 0.0) @ w2.T + b2

    # Default path: single grid step (tile covers the whole padded batch).
    out = jax.block_until_ready(three_class_nn_forward(x, w1, b1, w2, b2))
    assert out.shape == (batch_size, output_size)
    assert jnp.allclose(out, ref_fwd(x), atol=1e-5, rtol=1e-5)

    # Multi-tile path: non-multiple batch + explicit 128-row tile so the grid
    # has several steps (exercises pipelining / megacore sharding).
    x_big = jax.random.normal(kx2, (300, input_size), dtype=jnp.float32)
    out_big = jax.block_until_ready(
        three_class_nn_forward(x_big, w1, b1, w2, b2, tile_b=128))
    assert out_big.shape == (300, output_size)
    assert jnp.allclose(out_big, ref_fwd(x_big), atol=1e-5, rtol=1e-5)

    print("KERNEL_OK")
</pallas_src>

<mosaic_0001>
module attributes {stable_mosaic.version = 11 : i64} {
  func.func @_mlp_kernel(%arg0: i32, %arg1: memref<128x16xf32, #tpu.memory_space<vmem>>, %arg2: memref<32x16xf32, #tpu.memory_space<vmem>>, %arg3: memref<32x1xf32, #tpu.memory_space<vmem>>, %arg4: memref<8x32xf32, #tpu.memory_space<vmem>>, %arg5: memref<8x1xf32, #tpu.memory_space<vmem>>, %arg6: memref<8x128xf32, #tpu.memory_space<vmem>>) attributes {dimension_semantics = [#tpu.dimension_semantics<parallel>], iteration_bounds = array<i64: 1>, scalar_prefetch = 0 : i64, scratch_operands = 0 : i64, tpu.core_type = #tpu.core_type<tc>, window_params = [{transform_indices = @transform_0, window_bounds = array<i64: 128, 16>}, {pipeline_mode = #tpu.pipeline_mode<synchronous>, transform_indices = @transform_1, window_bounds = array<i64: 32, 16>}, {pipeline_mode = #tpu.pipeline_mode<synchronous>, transform_indices = @transform_2, window_bounds = array<i64: 32, 1>}, {pipeline_mode = #tpu.pipeline_mode<synchronous>, transform_indices = @transform_3, window_bounds = array<i64: 8, 32>}, {pipeline_mode = #tpu.pipeline_mode<synchronous>, transform_indices = @transform_4, window_bounds = array<i64: 8, 1>}, {transform_indices = @transform_5, window_bounds = array<i64: 8, 128>}]} {
    %c0 = arith.constant 0 : index
    %c0_0 = arith.constant 0 : index
    %0 = vector.load %arg1[%c0, %c0_0] : memref<128x16xf32, #tpu.memory_space<vmem>>, vector<128x16xf32>
    %c0_1 = arith.constant 0 : index
    %c0_2 = arith.constant 0 : index
    %1 = vector.load %arg2[%c0_1, %c0_2] : memref<32x16xf32, #tpu.memory_space<vmem>>, vector<32x16xf32>
    %cst = arith.constant dense<0.000000e+00> : vector<32x128xf32>
    %2 = tpu.matmul %1, %0, %cst {dimension_numbers = #tpu.dot_dimension_numbers<[1], [1], [0], [0], [0, 0, 1, 0], [], []>} : vector<32x16xf32>, vector<128x16xf32>, vector<32x128xf32> -> vector<32x128xf32>
    %c0_3 = arith.constant 0 : index
    %c0_4 = arith.constant 0 : index
    %3 = vector.load %arg3[%c0_3, %c0_4] : memref<32x1xf32, #tpu.memory_space<vmem>>, vector<32x1xf32>
    %4 = vector.broadcast %3 : vector<32x1xf32> to vector<32x128xf32>
    %5 = arith.addf %2, %4 : vector<32x128xf32>
    %cst_5 = arith.constant 0.000000e+00 : f32
    %6 = vector.broadcast %cst_5 : f32 to vector<32x128xf32>
    %7 = arith.maximumf %5, %6 : vector<32x128xf32>
    %c0_6 = arith.constant 0 : index
    %c0_7 = arith.constant 0 : index
    %8 = vector.load %arg4[%c0_6, %c0_7] : memref<8x32xf32, #tpu.memory_space<vmem>>, vector<8x32xf32>
    %cst_8 = arith.constant dense<0.000000e+00> : vector<8x128xf32>
    %9 = tpu.matmul %8, %7, %cst_8 {dimension_numbers = #tpu.dot_dimension_numbers<[1], [0], [0], [1], [0, 0, 1, 1], [], []>} : vector<8x32xf32>, vector<32x128xf32>, vector<8x128xf32> -> vector<8x128xf32>
    %c0_9 = arith.constant 0 : index
    %c0_10 = arith.constant 0 : index
    %10 = vector.load %arg5[%c0_9, %c0_10] : memref<8x1xf32, #tpu.memory_space<vmem>>, vector<8x1xf32>
    %11 = vector.broadcast %10 : vector<8x1xf32> to vector<8x128xf32>
    %12 = arith.addf %9, %11 : vector<8x128xf32>
    %c0_11 = arith.constant 0 : index
    %c0_12 = arith.constant 0 : index
    %13 = vector.load %arg6[%c0_11, %c0_12] : memref<8x128xf32, #tpu.memory_space<vmem>>, vector<8x128xf32>
    tpu.vector_store %arg6[%c0_11, %c0_12], %12 {strides = array<i32>} : memref<8x128xf32, #tpu.memory_space<vmem>>, vector<8x128xf32>,
    return
  }
  func.func @transform_0(%arg0: i32) -> (i32, i32) {
    %c0_i32 = arith.constant 0 : i32
    %c0_i32_0 = arith.constant 0 : i32
    return %arg0, %c0_i32 : i32, i32
  }
  func.func @transform_1(%arg0: i32) -> (i32, i32) {
    %c0_i32 = arith.constant 0 : i32
    %c0_i32_0 = arith.constant 0 : i32
    %c0_i32_1 = arith.constant 0 : i32
    return %c0_i32, %c0_i32_0 : i32, i32
  }
  func.func @transform_2(%arg0: i32) -> (i32, i32) {
    %c0_i32 = arith.constant 0 : i32
    %c0_i32_0 = arith.constant 0 : i32
    %c0_i32_1 = arith.constant 0 : i32
    return %c0_i32, %c0_i32_0 : i32, i32
  }
  func.func @transform_3(%arg0: i32) -> (i32, i32) {
    %c0_i32 = arith.constant 0 : i32
    %c0_i32_0 = arith.constant 0 : i32
    %c0_i32_1 = arith.constant 0 : i32
    return %c0_i32, %c0_i32_0 : i32, i32
  }
  func.func @transform_4(%arg0: i32) -> (i32, i32) {
    %c0_i32 = arith.constant 0 : i32
    %c0_i32_0 = arith.constant 0 : i32
    %c0_i32_1 = arith.constant 0 : i32
    return %c0_i32, %c0_i32_0 : i32, i32
  }
  func.func @transform_5(%arg0: i32) -> (i32, i32) {
    %c0_i32 = arith.constant 0 : i32
    %c0_i32_0 = arith.constant 0 : i32
    return %c0_i32, %arg0 : i32, i32
  }
}

</mosaic_0001>

<llo_original>
// kernel: tpu_custom_call.1
$region0: #{tpu_custom_call.1}
  #allocation0 [shape = 'u32[]', space=smem, size = 0x4, offset = 0x4, fixed_abs, tag = 'smem constant byte address 0x4 - core index']
  #allocation1 [shape = 'u32[72,128]{1,0:T(1,128)}', space=vmem, size = 0x9000, scoped, tag = 'internal scratch']
  %s0 = inlined_call_operand.vmem [shape: f32[128,16], index: 0, kind: input, shape index: {}]
  %s1 = inlined_call_operand.vmem [shape: f32[32,16], index: 1, kind: input, shape index: {}]
  %s2 = inlined_call_operand.vmem [shape: f32[32,1], index: 2, kind: input, shape index: {}]
  %s3 = inlined_call_operand.vmem [shape: f32[8,32], index: 3, kind: input, shape index: {}]
  %s4 = inlined_call_operand.vmem [shape: f32[8,1], index: 4, kind: input, shape index: {}]
  %s5 = inlined_call_operand.hbm [shape: f32[8,128], index: 5, kind: output, shape index: {}]
  %s6 = sld [smem:[#allocation0]]
  $region30: #{tpu_custom_call.1} parent=0
    _
  %s8 = ssub.s32 1, %s6
  %s9 = scalar_select 0, %s8, %s6
  $region1: #{tpu_custom_call.1} parent=0
    #allocation2 [shape = 'u8[4096]{0}', space=vmem, size = 0x1000, scoped, tag = 'output window, operand 0, single buffered']
    #allocation3 [shape = 's32[1]{0}', space=sflag, size = 0x4, scoped, tag = 'scoped memory for tpu_custom_call.1']
    %10 = vsyncpa [#allocation3], 0
    // Predicated region
    $region2: #{tpu_custom_call.1} parent=1 // pred_check
      _
    $region3: #{tpu_custom_call.1} parent=1 // pred_check_branch
      %12 = sbr.rel (0) target = $region5
    $region4: #{tpu_custom_call.1} parent=1 // pred_region
      _
    $region5: #{tpu_custom_call.1} parent=1 // pred_fallthru
      _
    // Predicated region
    $region6: #{tpu_custom_call.1} parent=1 // pred_check
      _
    $region7: #{tpu_custom_call.1} parent=1 // pred_check_branch
      %14 = sbr.rel (0) target = $region9
    $region8: #{tpu_custom_call.1} parent=1 // pred_region
      _
    $region9: #{tpu_custom_call.1} parent=1 // pred_fallthru
      _
    // Predicated region
    $region10: #{tpu_custom_call.1} parent=1 // pred_check
      _
    $region11: #{tpu_custom_call.1} parent=1 // pred_check_branch
      %16 = sbr.rel (0) target = $region13
    $region12: #{tpu_custom_call.1} parent=1 // pred_region
      _
    $region13: #{tpu_custom_call.1} parent=1 // pred_fallthru
      _
    // Predicated region
    $region14: #{tpu_custom_call.1} parent=1 // pred_check
      _
    $region15: #{tpu_custom_call.1} parent=1 // pred_check_branch
      %18 = sbr.rel (0) target = $region17
    $region16: #{tpu_custom_call.1} parent=1 // pred_region
      _
    $region17: #{tpu_custom_call.1} parent=1 // pred_fallthru
      _
    // Predicated region
    $region18: #{tpu_custom_call.1} parent=1 // pred_check
      _
    $region19: #{tpu_custom_call.1} parent=1 // pred_check_branch
      %20 = sbr.rel (0) target = $region21
    $region20: #{tpu_custom_call.1} parent=1 // pred_region
      _
    $region21: #{tpu_custom_call.1} parent=1 // pred_fallthru
      _
    %v21 = vld [vmem:[%s0] sm:$0xff]
    %v22 = vld [vmem:[%s0 + $0x8] sm:$0xff]
    %v23 = vld [vmem:[%s0 + $0x10] sm:$0xff]
    %v24 = vld [vmem:[%s0 + $0x18] sm:$0xff]
    %v25 = vld [vmem:[%s0 + $0x20] sm:$0xff]
    %v26 = vld [vmem:[%s0 + $0x28] sm:$0xff]
    %v27 = vld [vmem:[%s0 + $0x30] sm:$0xff]
    %v28 = vld [vmem:[%s0 + $0x38] sm:$0xff]
    %v29 = vld [vmem:[%s0 + $0x40] sm:$0xff]
    %v30 = vld [vmem:[%s0 + $0x48] sm:$0xff]
    %v31 = vld [vmem:[%s0 + $0x50] sm:$0xff]
    %v32 = vld [vmem:[%s0 + $0x58] sm:$0xff]
    %v33 = vld [vmem:[%s0 + $0x60] sm:$0xff]
    %v34 = vld [vmem:[%s0 + $0x68] sm:$0xff]
    %v35 = vld [vmem:[%s0 + $0x70] sm:$0xff]
    %v36 = vld [vmem:[%s0 + $0x78] sm:$0xff]
    %v37 = vld [vmem:[%s1] sm:$0xff]
    %v38 = vld [vmem:[%s1 + $0x8] sm:$0xff]
    %v39 = vld [vmem:[%s1 + $0x10] sm:$0xff]
    %v40 = vld [vmem:[%s1 + $0x18] sm:$0xff]
    %v41 = vld [vmem:[%s2] sm:$0xff]
    %v42 = vld [vmem:[%s2 + $0x8] sm:$0xff]
    %v43 = vld [vmem:[%s2 + $0x10] sm:$0xff]
    %v44 = vld [vmem:[%s2 + $0x18] sm:$0xff]
    %46 = vset.pattern.permute.xlu0 0
    %47 = vperm.xlu0 %46, %v41
    %v48 = vpop.permute.xlu0 %47
    %51 = vset.pattern.permute.xlu0 0
    %52 = vperm.xlu0 %51, %v42
    %v53 = vpop.permute.xlu0 %52
    %56 = vset.pattern.permute.xlu0 0
    %57 = vperm.xlu0 %56, %v43
    %v58 = vpop.permute.xlu0 %57
    %61 = vset.pattern.permute.xlu0 0
    %62 = vperm.xlu0 %61, %v44
    %v63 = vpop.permute.xlu0 %62
    %vm65 = vcmask 130048
    %v67 = vsel %vm65, %v37, 0
    %v70 = vsel %vm65, %v38, 0
    %v73 = vsel %vm65, %v39, 0
    %v76 = vsel %vm65, %v40, 0
    %v79 = vsel %vm65, %v21, 0
    %v82 = vsel %vm65, %v22, 0
    %v85 = vsel %vm65, %v23, 0
    %v88 = vsel %vm65, %v24, 0
    %v91 = vsel %vm65, %v25, 0
    %v94 = vsel %vm65, %v26, 0
    %v97 = vsel %vm65, %v27, 0
    %v100 = vsel %vm65, %v28, 0
    %v103 = vsel %vm65, %v29, 0
    %v106 = vsel %vm65, %v30, 0
    %v109 = vsel %vm65, %v31, 0
    %v112 = vsel %vm65, %v32, 0
    %v115 = vsel %vm65, %v33, 0
    %v118 = vsel %vm65, %v34, 0
    %v121 = vsel %vm65, %v35, 0
    %v124 = vsel %vm65, %v36, 0
    %126 = vmatpush.xpose.msra.mxu0 %v124
    %127 = vmatpush.xpose.msra.mxu0 %v121
    %128 = vmatpush.xpose.msra.mxu0 %v118
    %129 = vmatpush.xpose.msra.mxu0 %v115
    %130 = vmatpush.xpose.msra.mxu0 %v112
    %131 = vmatpush.xpose.msra.mxu0 %v109
    %132 = vmatpush.xpose.msra.mxu0 %v106
    %133 = vmatpush.xpose.msra.mxu0 %v103
    %134 = vmatpush.xpose.msra.mxu0 %v100
    %135 = vmatpush.xpose.msra.mxu0 %v97
    %136 = vmatpush.xpose.msra.mxu0 %v94
    %137 = vmatpush.xpose.msra.mxu0 %v91
    %138 = vmatpush.xpose.msra.mxu0 %v88
    %139 = vmatpush.xpose.msra.mxu0 %v85
    %140 = vmatpush.xpose.msra.mxu0 %v82
    %141 = vmatpush.xpose.msra.mxu0 %v79
    %142 = vmatmul.f32.gmra.mxu0 %v67
    %v143 = vpop.f32.mrf.mxu0
    %v144 = vadd.f32 %v48, %v143
    %145 = vmatmul.f32.gmra.mxu0 %v70
    %v146 = vpop.f32.mrf.mxu0
    %v147 = vadd.f32 %v53, %v146
    %148 = vmatmul.f32.gmra.mxu0 %v73
    %v149 = vpop.f32.mrf.mxu0
    %v150 = vadd.f32 %v58, %v149
    %151 = vmatmul.f32.gmra.mxu0 %v76
    %v152 = vpop.f32.mrf.mxu0
    %v153 = vadd.f32 %v63, %v152
    %154 = vdwg.mxu0
    %v155 = vmax.f32 %v144, 0.0
    %v156 = vmax.f32 %v147, 0.0
    %v157 = vmax.f32 %v150, 0.0
    %v158 = vmax.f32 %v153, 0.0
    %v159 = vld [vmem:[%s3] sm:$0xff]
    %v160 = vld [vmem:[%s4] sm:$0xff]
    %162 = vset.pattern.permute.xlu0 0
    %163 = vperm.xlu0 %162, %v160
    %v164 = vpop.permute.xlu0 %163
    %vm166 = vcmask 261120
    %v168 = vsel %vm166, %v159, 0
    %170 = vmatpush.msra.mxu0 0.0
    %171 = vmatpush.msra.mxu0 0.0
    %172 = vmatpush.msra.mxu0 0.0
    %173 = vmatpush.msra.mxu0 0.0
    %174 = vmatpush.msra.mxu0 0.0
    %175 = vmatpush.msra.mxu0 0.0
    %176 = vmatpush.msra.mxu0 0.0
    %177 = vmatpush.msra.mxu0 0.0
    %178 = vmatpush.msra.mxu0 0.0
    %179 = vmatpush.msra.mxu0 0.0
    %180 = vmatpush.msra.mxu0 0.0
    %181 = vmatpush.msra.mxu0 0.0
    %182 = vmatpush.msra.mxu0 %v158
    %183 = vmatpush.msra.mxu0 %v157
    %184 = vmatpush.msra.mxu0 %v156
    %185 = vmatpush.msra.mxu0 %v155
    %186 = vmatmul.f32.gmra.mxu0 %v168
    %v187 = vpop.f32.mrf.mxu0
    %v188 = vadd.f32 %v164, %v187
    %189 = vdwg.mxu0
    %190 = vst [vmem:[#allocation2] sm:$0xff] %v188
    // Predicated region
    $region22: #{tpu_custom_call.1} parent=1 // pred_check
      _
    $region23: #{tpu_custom_call.1} parent=1 // pred_check_branch
      %192 = sbr.rel (0) target = $region25
    $region24: #{tpu_custom_call.1} parent=1 // pred_region
      %194 = vsyncadd [#allocation3], 0
      %s196 = sshll.u32 [#allocation2], 4
      %s197 = int_to_ptr.vmem [resolvable:$true] %s196
      %s198 = sshll.u32 %s5, 4
      %s199 = int_to_ptr.hbm [resolvable:$true] %s198
      %201 = dma.vmem_to_hbm [thread:$0]  %s197, 128, %s199, [#allocation3]
    $region25: #{tpu_custom_call.1} parent=1 // pred_fallthru
      _
    // Predicated region
    $region26: #{tpu_custom_call.1} parent=1 // pred_check
      _
    $region27: #{tpu_custom_call.1} parent=1 // pred_check_branch
      %203 = sbr.rel (0) target = $region29
    $region28: #{tpu_custom_call.1} parent=1 // pred_region
      %205 = dma.done [#allocation3], 128
    $region29: #{tpu_custom_call.1} parent=1 // pred_fallthru
      _
    %206 = vsyncpa [#allocation3], 1

</llo_original>
